<compile_context>
chip_gen: v7x
topology: tpu7x:2x2x1
jax: 0.10.0
libtpu: 0.0.40
codegen_flags: <defaults>
</compile_context>

<pallas_src>
import functools

import jax
import jax.numpy as jnp
from jax import lax
from jax.experimental import pallas as pl
from jax.experimental.pallas import tpu as pltpu

_LANES = 128
_MAX_TILE_ROWS = 4096   # 2 MiB per f32 input block; ~10 MiB VMEM with 2x buffering
_MAX_SPLITS = 2         # shard reduction across TensorCores on v7x; no-op on v5e/v6e


def _round_up(x, m):
    return (x + m - 1) // m * m


def _sumsq_kernel(x_ref, y_ref, part_ref, acc_ref, *, tile_rows, rows,
                  blocks_per_split, mask_needed):
    c = pl.program_id(0)   # TensorCore split ("parallel")
    i = pl.program_id(1)   # reduction step ("arbitrary")

    @pl.when(i == 0)
    def _():
        acc_ref[...] = jnp.zeros_like(acc_ref)

    d = x_ref[...].astype(jnp.float32) - y_ref[...].astype(jnp.float32)
    if mask_needed:
        # Logical (unclamped) block index -> global row offset of this block.
        # Zeros out (a) garbage rows past the end of the array in the last
        # partial block and (b) fully out-of-range clamped duplicate blocks.
        blk = c * blocks_per_split + i
        row0 = blk * tile_rows
        row_ids = row0 + lax.broadcasted_iota(jnp.int32, (tile_rows, _LANES), 0)
        d = jnp.where(row_ids < rows, d, 0.0)
    acc_ref[...] += d * d

    @pl.when(i == pl.num_programs(1) - 1)
    def _():
        # Single cross-lane/sublane reduce per split, done once at the end.
        part_ref[0, 0] = jnp.sum(acc_ref[...])


def exp_psnr_loss(x, y, max_pixel_value=1.0, alpha=0.1):
    assert x.shape == y.shape, "input/target shape mismatch"
    n_elems = x.size
    assert n_elems > 0

    # Flatten; pad only to a multiple of 128 lanes.  Keep the native dtype
    # (narrow dtypes stay narrow in HBM); the f32 cast happens in-kernel.
    xf = x.reshape(-1)
    yf = y.reshape(-1)
    pad = (-n_elems) % _LANES
    if pad:
        xf = jnp.pad(xf, (0, pad))
        yf = jnp.pad(yf, (0, pad))
    rows = (n_elems + pad) // _LANES
    x2d = xf.reshape(rows, _LANES)
    y2d = yf.reshape(rows, _LANES)

    # Large lane-dense blocks; round the row count up to 32 so the block is
    # legal for any input dtype's minimum sublane tiling.
    tile_rows = min(_MAX_TILE_ROWS, _round_up(rows, 32))
    n_blocks = pl.cdiv(rows, tile_rows)
    num_splits = _MAX_SPLITS if n_blocks >= _MAX_SPLITS else 1
    blocks_per_split = pl.cdiv(n_blocks, num_splits)

    # Masking is only required when the grid does not perfectly tile the rows:
    # tail rows in the last block, or a clamped duplicate block on one split.
    mask_needed = (rows % tile_rows != 0) or (num_splits * blocks_per_split > n_blocks)

    def in_map(c, i):
        # Clamp so the DMA never walks past the end of the array; fully
        # out-of-range logical blocks are masked to zero inside the kernel.
        return (jnp.minimum(c * blocks_per_split + i, n_blocks - 1), 0)

    kernel = functools.partial(
        _sumsq_kernel,
        tile_rows=tile_rows,
        rows=rows,
        blocks_per_split=blocks_per_split,
        mask_needed=mask_needed,
    )

    partials = pl.pallas_call(
        kernel,
        out_shape=jax.ShapeDtypeStruct((num_splits, 1), jnp.float32),
        grid_spec=pltpu.PrefetchScalarGridSpec(
            num_scalar_prefetch=0,
            grid=(num_splits, blocks_per_split),
            in_specs=[
                pl.BlockSpec((tile_rows, _LANES), in_map),
                pl.BlockSpec((tile_rows, _LANES), in_map),
            ],
            out_specs=pl.BlockSpec(
                (1, 1), lambda c, i: (c, 0), memory_space=pltpu.MemorySpace.SMEM
            ),
            scratch_shapes=[pltpu.VMEM((tile_rows, _LANES), jnp.float32)],
        ),
        compiler_params=pltpu.CompilerParams(
            dimension_semantics=("parallel", "arbitrary"),
        ),
    )(x2d, y2d)

    # Tiny scalar epilogue in plain JAX: combine per-core partials + log/exp.
    sum_sq = jnp.sum(partials)
    mse = sum_sq / jnp.float32(n_elems)
    psnr = 20.0 * jnp.log10(jnp.float32(max_pixel_value) / jnp.sqrt(mse))
    return jnp.exp(-alpha * psnr)


def _ref_exp_psnr_loss(x, y, max_pixel_value=1.0, alpha=0.1):
    mse = jnp.mean((x.astype(jnp.float32) - y.astype(jnp.float32)) ** 2)
    psnr = 20.0 * jnp.log10(max_pixel_value / jnp.sqrt(mse))
    return jnp.exp(-alpha * psnr)


if __name__ == "__main__":
    key = jax.random.PRNGKey(0)
    k1, k2 = jax.random.split(key)
    # NCHW, like the PyTorch module's typical image inputs.
    x = jax.random.uniform(k1, (2, 4, 16, 16), dtype=jnp.float32)
    y = jax.random.uniform(k2, (2, 4, 16, 16), dtype=jnp.float32)

    loss = exp_psnr_loss(x, y, max_pixel_value=1.0, alpha=0.1)
    loss = jax.block_until_ready(loss)

    ref = _ref_exp_psnr_loss(x, y, max_pixel_value=1.0, alpha=0.1)
    assert jnp.allclose(loss, ref, rtol=1e-5, atol=1e-6), (loss, ref)
    print("KERNEL_OK")
</pallas_src>

<mosaic_0001>
module attributes {stable_mosaic.version = 11 : i64} {
  func.func @_sumsq_kernel(%arg0: i32, %arg1: i32, %arg2: memref<32x128xf32, #tpu.memory_space<vmem>>, %arg3: memref<32x128xf32, #tpu.memory_space<vmem>>, %arg4: memref<1x1xf32, #tpu.memory_space<smem>>, %arg5: memref<32x128xf32, #tpu.memory_space<vmem>>) attributes {dimension_semantics = [#tpu.dimension_semantics<parallel>, #tpu.dimension_semantics<arbitrary>], iteration_bounds = array<i64: 1, 1>, scalar_prefetch = 0 : i64, scratch_operands = 1 : i64, tpu.core_type = #tpu.core_type<tc>, window_params = [{transform_indices = @transform_0, window_bounds = array<i64: 32, 128>}, {transform_indices = @transform_1, window_bounds = array<i64: 32, 128>}, {transform_indices = @transform_2, window_bounds = array<i64: 1, 1>}]} {
    %c0_i32 = arith.constant 0 : i32
    %0 = arith.cmpi eq, %arg1, %c0_i32 : i32
    %1 = arith.extui %0 : i1 to i32
    %c0_i32_0 = arith.constant 0 : i32
    %2 = arith.cmpi ne, %1, %c0_i32_0 : i32
    scf.if %2 {
      %cst_10 = arith.constant 0.000000e+00 : f32
      %23 = vector.broadcast %cst_10 : f32 to vector<32x128xf32>
      %c0_11 = arith.constant 0 : index
      %c0_12 = arith.constant 0 : index
      %24 = vector.load %arg5[%c0_11, %c0_12] : memref<32x128xf32, #tpu.memory_space<vmem>>, vector<32x128xf32>
      tpu.vector_store %arg5[%c0_11, %c0_12], %23 {strides = array<i32>} : memref<32x128xf32, #tpu.memory_space<vmem>>, vector<32x128xf32>,
    } else {
    }
    %c0 = arith.constant 0 : index
    %c0_1 = arith.constant 0 : index
    %3 = vector.load %arg2[%c0, %c0_1] : memref<32x128xf32, #tpu.memory_space<vmem>>, vector<32x128xf32>
    %c0_2 = arith.constant 0 : index
    %c0_3 = arith.constant 0 : index
    %4 = vector.load %arg3[%c0_2, %c0_3] : memref<32x128xf32, #tpu.memory_space<vmem>>, vector<32x128xf32>
    %5 = arith.subf %3, %4 : vector<32x128xf32>
    %c1_i32 = arith.constant 1 : i32
    %6 = arith.muli %arg0, %c1_i32 : i32
    %7 = arith.addi %6, %arg1 : i32
    %c32_i32 = arith.constant 32 : i32
    %8 = arith.muli %7, %c32_i32 : i32
    %9 = tpu.iota {dimensions = array<i32: 0>} : vector<32x128xi32>
    %10 = vector.broadcast %8 : i32 to vector<32x128xi32>
    %11 = arith.addi %10, %9 : vector<32x128xi32>
    %c16_i32 = arith.constant 16 : i32
    %12 = vector.broadcast %c16_i32 : i32 to vector<32x128xi32>
    %13 = arith.cmpi slt, %11, %12 : vector<32x128xi32>
    %cst = arith.constant 0.000000e+00 : f32
    %14 = vector.broadcast %cst : f32 to vector<32x128xf32>
    %15 = arith.select %13, %5, %14 : vector<32x128xi1>, vector<32x128xf32>
    %c0_4 = arith.constant 0 : index
    %c0_5 = arith.constant 0 : index
    %16 = vector.load %arg5[%c0_4, %c0_5] : memref<32x128xf32, #tpu.memory_space<vmem>>, vector<32x128xf32>
    %17 = arith.mulf %15, %15 : vector<32x128xf32>
    %18 = arith.addf %16, %17 : vector<32x128xf32>
    %c0_6 = arith.constant 0 : index
    %c0_7 = arith.constant 0 : index
    %19 = vector.load %arg5[%c0_6, %c0_7] : memref<32x128xf32, #tpu.memory_space<vmem>>, vector<32x128xf32>
    tpu.vector_store %arg5[%c0_6, %c0_7], %18 {strides = array<i32>} : memref<32x128xf32, #tpu.memory_space<vmem>>, vector<32x128xf32>,
    %c0_i32_8 = arith.constant 0 : i32
    %20 = arith.cmpi eq, %arg1, %c0_i32_8 : i32
    %21 = arith.extui %20 : i1 to i32
    %c0_i32_9 = arith.constant 0 : i32
    %22 = arith.cmpi ne, %21, %c0_i32_9 : i32
    scf.if %22 {
      %c0_10 = arith.constant 0 : index
      %c0_11 = arith.constant 0 : index
      %23 = vector.load %arg5[%c0_10, %c0_11] : memref<32x128xf32, #tpu.memory_space<vmem>>, vector<32x128xf32>
      %24 = vector.shape_cast %23 : vector<32x128xf32> to vector<1x32x128xf32>
      %cst_12 = arith.constant dense<0.000000e+00> : vector<1xf32>
      %25 = vector.multi_reduction <add>, %24, %cst_12 [1, 2] : vector<1x32x128xf32> to vector<1xf32>
      %26 = vector.shape_cast %25 : vector<1xf32> to vector<1x1x1xf32>
      %27 = vector.extract %26[0, 0, 0] : f32 from vector<1x1x1xf32>
      %c0_13 = arith.constant 0 : index
      %c0_14 = arith.constant 0 : index
      %28 = memref.load %arg4[%c0_13, %c0_14] : memref<1x1xf32, #tpu.memory_space<smem>>
      memref.store %27, %arg4[%c0_13, %c0_14] : memref<1x1xf32, #tpu.memory_space<smem>>
    } else {
    }
    return
  }
  func.func @transform_0(%arg0: i32, %arg1: i32) -> (i32, i32) {
    %c1_i32 = arith.constant 1 : i32
    %0 = arith.muli %arg0, %c1_i32 : i32
    %1 = arith.addi %0, %arg1 : i32
    %c0_i32 = arith.constant 0 : i32
    %2 = arith.minsi %1, %c0_i32 : i32
    %c0_i32_0 = arith.constant 0 : i32
    %c0_i32_1 = arith.constant 0 : i32
    return %2, %c0_i32_0 : i32, i32
  }
  func.func @transform_1(%arg0: i32, %arg1: i32) -> (i32, i32) {
    %c1_i32 = arith.constant 1 : i32
    %0 = arith.muli %arg0, %c1_i32 : i32
    %1 = arith.addi %0, %arg1 : i32
    %c0_i32 = arith.constant 0 : i32
    %2 = arith.minsi %1, %c0_i32 : i32
    %c0_i32_0 = arith.constant 0 : i32
    %c0_i32_1 = arith.constant 0 : i32
    return %2, %c0_i32_0 : i32, i32
  }
  func.func @transform_2(%arg0: i32, %arg1: i32) -> (i32, i32) {
    %c0_i32 = arith.constant 0 : i32
    %c0_i32_0 = arith.constant 0 : i32
    return %arg0, %c0_i32 : i32, i32
  }
}

</mosaic_0001>

<llo_original>
// kernel: tpu_custom_call.1
$region0: #{tpu_custom_call.1}
  #allocation0 [shape = 'u32[]', space=smem, size = 0x4, offset = 0x4, fixed_abs, tag = 'smem constant byte address 0x4 - core index']
  #allocation1 [shape = 'u32[144,128]{1,0:T(1,128)}', space=vmem, size = 0x12000, scoped, tag = 'internal scratch']
  #allocation2 [shape = 'f32[32,128]{1,0:T(8,128)}', space=vmem, size = 0x4000, scoped, tag = 'scratch operand']
  %s0 = inlined_call_operand.hbm [shape: f32[16,128], index: 0, kind: input, shape index: {}]
  %s1 = inlined_call_operand.hbm [shape: f32[16,128], index: 1, kind: input, shape index: {}]
  %s2 = inlined_call_operand.hbm [shape: f32[1,1], index: 2, kind: output, shape index: {}]
  %s3 = sld [smem:[#allocation0]]
  $region34: #{tpu_custom_call.1} parent=0
    _
  %s5 = ssub.s32 1, %s3
  %s6 = scalar_select 0, %s5, %s3
  $region1: #{tpu_custom_call.1} parent=0
    #allocation3 [shape = 'u8[16384]{0}', space=vmem, size = 0x4000, scoped, tag = 'input window, operand 0, single buffered']
    #allocation4 [shape = 's32[1]{0}', space=sflag, size = 0x4, scoped, tag = 'scoped memory for tpu_custom_call.1']
    #allocation5 [shape = 's32[1]{0}', space=sflag, size = 0x4, scoped, tag = 'scoped memory for tpu_custom_call.1']
    #allocation6 [shape = 'u8[16384]{0}', space=vmem, size = 0x4000, scoped, tag = 'input window, operand 1, single buffered']
    #allocation7 [shape = 's32[1]{0}', space=sflag, size = 0x4, scoped, tag = 'scoped memory for tpu_custom_call.1']
    #allocation8 [shape = 'u8[512]{0}', space=smem, size = 0x200, scoped, tag = 'output window, operand 0, single buffered']
    %7 = vsyncpa [#allocation4], 0
    %8 = vsyncpa [#allocation7], 0
    %9 = vsyncpa [#allocation5], 0
    // Predicated region
    $region2: #{tpu_custom_call.1} parent=1 // pred_check
      _
    $region3: #{tpu_custom_call.1} parent=1 // pred_check_branch
      %11 = sbr.rel (0) target = $region5
    $region4: #{tpu_custom_call.1} parent=1 // pred_region
      %s12 = sadd.s32 0, 0
      %p13 = scmp.lt.s32.totalorder %s12, 0
      %s14 = scalar_select %p13, %s12, 0
      %s15 = smul.u32 4, %s14
      %s16 = ssub.s32 2, %s15
      %s17 = smul.u32 128, %s16
      %s19 = ssub.s32 512, %s17
      %20 = vsyncadd [#allocation4], %s19
      %p21 = scmp.ne.s32.totalorder 0, %s17
      %s22 = smul.addr %s15, 128
      %s23 = scalar_lea.hbm %s0, %s22
      %s24 = smul.u32 8, %s16
      %s25 = sshll.u32 [#allocation3], 4
      %s26 = int_to_ptr.vmem [resolvable:$true] %s25
      %s27 = sshll.u32 %s24, 4
      %31 = dma.hbm_to_vmem [thread:$0]  (%p21), %s23, %s27, %s26, [#allocation4], 128, 128, 8
    $region5: #{tpu_custom_call.1} parent=1 // pred_fallthru
      _
    // Predicated region
    $region6: #{tpu_custom_call.1} parent=1 // pred_check
      _
    $region7: #{tpu_custom_call.1} parent=1 // pred_check_branch
      %33 = sbr.rel (0) target = $region9
    $region8: #{tpu_custom_call.1} parent=1 // pred_region
      %s34 = sadd.s32 0, 0
      %p35 = scmp.lt.s32.totalorder %s34, 0
      %s36 = scalar_select %p35, %s34, 0
      %s37 = smul.u32 4, %s36
      %s38 = ssub.s32 2, %s37
      %s39 = smul.u32 128, %s38
      %s41 = ssub.s32 512, %s39
      %42 = vsyncadd [#allocation7], %s41
      %p43 = scmp.ne.s32.totalorder 0, %s39
      %s44 = smul.addr %s37, 128
      %s45 = scalar_lea.hbm %s1, %s44
      %s46 = smul.u32 8, %s38
      %s47 = sshll.u32 [#allocation6], 4
      %s48 = int_to_ptr.vmem [resolvable:$true] %s47
      %s49 = sshll.u32 %s46, 4
      %53 = dma.hbm_to_vmem [thread:$0]  (%p43), %s45, %s49, %s48, [#allocation7], 128, 128, 8
    $region9: #{tpu_custom_call.1} parent=1 // pred_fallthru
      _
    // Predicated region
    $region10: #{tpu_custom_call.1} parent=1 // pred_check
      _
    $region11: #{tpu_custom_call.1} parent=1 // pred_check_branch
      %55 = sbr.rel (0) target = $region13
    $region12: #{tpu_custom_call.1} parent=1 // pred_region
      %56 = dma.done [#allocation4], 512
    $region13: #{tpu_custom_call.1} parent=1 // pred_fallthru
      _
    // Predicated region
    $region14: #{tpu_custom_call.1} parent=1 // pred_check
      _
    $region15: #{tpu_custom_call.1} parent=1 // pred_check_branch
      %58 = sbr.rel (0) target = $region17
    $region16: #{tpu_custom_call.1} parent=1 // pred_region
      %59 = dma.done [#allocation7], 512
    $region17: #{tpu_custom_call.1} parent=1 // pred_fallthru
      _
    %s60 = sadd.s32 0, 0
    %p61 = scmp.lt.s32.totalorder %s60, 0
    %s62 = scalar_select %p61, %s60, 0
    %s63 = smul.u32 4, %s62
    %s64 = ssub.s32 2, %s63
    %s65 = smul.u32 128, %s64
    %s66 = sadd.s32 0, 0
    %p67 = scmp.lt.s32.totalorder %s66, 0
    %s68 = scalar_select %p67, %s66, 0
    %s69 = smul.u32 4, %s68
    %s70 = ssub.s32 2, %s69
    %s71 = smul.u32 128, %s70
    %p72 = scmp.eq.s32.totalorder 0, 0
    // Predicated region
    $region18: #{tpu_custom_call.1} parent=1 // pred_check
      %p73 = pneg %p72
    $region19: #{tpu_custom_call.1} parent=1 // pred_check_branch
      %75 = sbr.rel (%p73) target = $region21
    $region20: #{tpu_custom_call.1} parent=1 // pred_region
      %76 = vst [vmem:[#allocation2] sm:$0xff] 0.0
      %77 = vst [vmem:[#allocation2 + $0x8] sm:$0xff] 0.0
      %78 = vst [vmem:[#allocation2 + $0x10] sm:$0xff] 0.0
      %79 = vst [vmem:[#allocation2 + $0x18] sm:$0xff] 0.0
    $region21: #{tpu_custom_call.1} parent=1 // pred_fallthru
      _
    %v80 = vld [vmem:[#allocation3] sm:$0xff]
    %v81 = vld [vmem:[#allocation3 + $0x8] sm:$0xff]
    %v82 = vld [vmem:[#allocation3 + $0x10] sm:$0xff]
    %v83 = vld [vmem:[#allocation3 + $0x18] sm:$0xff]
    %v84 = vld [vmem:[#allocation6] sm:$0xff]
    %v85 = vld [vmem:[#allocation6 + $0x8] sm:$0xff]
    %v86 = vld [vmem:[#allocation6 + $0x10] sm:$0xff]
    %v87 = vld [vmem:[#allocation6 + $0x18] sm:$0xff]
    %v88 = vsub.f32 %v80, %v84
    %v89 = vsub.f32 %v81, %v85
    %v90 = vsub.f32 %v82, %v86
    %v91 = vsub.f32 %v83, %v87
    %s92 = sadd.s32 0, 0
    %s93 = smul.u32 %s92, 32
    %v94 = vlaneseq
    %v95 = vshrl.u32 %v94, 7
    %v96 = vadd.s32 %v95, 8
    %v97 = vadd.s32 %v95, 16
    %v98 = vadd.s32 %v95, 24
    %v99 = vstv %s93
    %v100 = vadd.s32 %v99, %v95
    %v101 = vadd.s32 %v99, %v96
    %v102 = vadd.s32 %v99, %v97
    %v103 = vadd.s32 %v99, %v98
    %vm104 = vcmp.lt.s32.totalorder %v100, 16
    %vm105 = vcmp.lt.s32.totalorder %v101, 16
    %vm106 = vcmp.lt.s32.totalorder %v102, 16
    %vm107 = vcmp.lt.s32.totalorder %v103, 16
    %v108 = vsel %vm104, %v88, 0.0
    %v109 = vsel %vm105, %v89, 0.0
    %v110 = vsel %vm106, %v90, 0.0
    %v111 = vsel %vm107, %v91, 0.0
    %v112 = vld [vmem:[#allocation2] sm:$0xff]
    %v113 = vld [vmem:[#allocation2 + $0x8] sm:$0xff]
    %v114 = vld [vmem:[#allocation2 + $0x10] sm:$0xff]
    %v115 = vld [vmem:[#allocation2 + $0x18] sm:$0xff]
    %v116 = vmul.f32 %v108, %v108
    %v117 = vmul.f32 %v109, %v109
    %v118 = vmul.f32 %v110, %v110
    %v119 = vmul.f32 %v111, %v111
    %v120 = vadd.f32 %v112, %v116
    %v121 = vadd.f32 %v113, %v117
    %v122 = vadd.f32 %v114, %v118
    %v123 = vadd.f32 %v115, %v119
    %124 = vst [vmem:[#allocation2] sm:$0xff] %v120
    %125 = vst [vmem:[#allocation2 + $0x8] sm:$0xff] %v121
    %126 = vst [vmem:[#allocation2 + $0x10] sm:$0xff] %v122
    %127 = vst [vmem:[#allocation2 + $0x18] sm:$0xff] %v123
    // Predicated region
    $region22: #{tpu_custom_call.1} parent=1 // pred_check
      %p128 = pneg %p72
    $region23: #{tpu_custom_call.1} parent=1 // pred_check_branch
      %130 = sbr.rel (%p128) target = $region25
    $region24: #{tpu_custom_call.1} parent=1 // pred_region
      %v131 = vld [vmem:[#allocation2] sm:$0xff]
      %v132 = vld [vmem:[#allocation2 + $0x8] sm:$0xff]
      %v133 = vld [vmem:[#allocation2 + $0x10] sm:$0xff]
      %v134 = vld [vmem:[#allocation2 + $0x18] sm:$0xff]
      %v135 = vadd.f32 %v131, %v132
      %v136 = vadd.f32 %v135, %v133
      %v137 = vadd.f32 %v136, %v134
      %138 = vadd.xlane.f32.xlu0 %v137
      %v139 = vpop.xlane.xlu0 %138
      %v140 = vrot.slane %v139, 4
      %v141 = vadd.f32 %v139, %v140
      %v142 = vrot.slane %v141, 2
      %v143 = vadd.f32 %v141, %v142
      %v144 = vrot.slane %v143, 1
      %v145 = vadd.f32 %v143, %v144
      %s146 = vtos %v145
      %s147 = scalar_lea.smem [#allocation8], 0
      %148 = sst [smem:[%s147]] %s146
    $region25: #{tpu_custom_call.1} parent=1 // pred_fallthru
      _
    // Predicated region
    $region26: #{tpu_custom_call.1} parent=1 // pred_check
      _
    $region27: #{tpu_custom_call.1} parent=1 // pred_check_branch
      %150 = sbr.rel (0) target = $region29
    $region28: #{tpu_custom_call.1} parent=1 // pred_region
      %s152 = ssub.s32 16, 16
      %153 = vsyncadd [#allocation5], %s152
      %156 = dma.smem_to_hbm [#allocation8], 16, %s2, [#allocation5]
    $region29: #{tpu_custom_call.1} parent=1 // pred_fallthru
      _
    // Predicated region
    $region30: #{tpu_custom_call.1} parent=1 // pred_check
      _
    $region31: #{tpu_custom_call.1} parent=1 // pred_check_branch
      %158 = sbr.rel (0) target = $region33
    $region32: #{tpu_custom_call.1} parent=1 // pred_region
      %159 = dma.done [#allocation5], 16
    $region33: #{tpu_custom_call.1} parent=1 // pred_fallthru
      _
    %160 = sfence
    %161 = vsyncpa [#allocation4], 1
    %162 = vsyncpa [#allocation7], 1
    %163 = vsyncpa [#allocation5], 1

</llo_original>
